<compile_context>
chip_gen: v5e
topology: v5e:2x2
jax: 0.10.0
libtpu: 0.0.40
codegen_flags: <defaults>
</compile_context>

<pallas_src>
import functools

import jax
import jax.numpy as jnp
from jax.experimental import pallas as pl
from jax.experimental.pallas import tpu as pltpu

LEAKY_SLOPE = 0.01  # torch.nn.LeakyReLU default negative_slope
_LANE = 128
_SUBLANE = 8


def _fused_mlp_kernel(*refs, n_layers: int):
    """Fused MLP:  h = x; for each layer: h = h @ W + b (+LeakyReLU except last)."""
    x_ref = refs[0]
    o_ref = refs[-1]
    param_refs = refs[1:-1]               # w0, b0, w1, b1, ...  (w is (in, out))

    h = x_ref[...].astype(jnp.float32)    # (B, in)
    for i in range(n_layers):             # unrolled at trace time
        w = param_refs[2 * i][...]        # (in_i, out_i) — pre-transposed
        b = param_refs[2 * i + 1][...]    # (1, out_i)
        h = jnp.dot(h, w, preferred_element_type=jnp.float32) + b   # MXU + VPU
        if i < n_layers - 1:
            h = jnp.where(h >= 0.0, h, LEAKY_SLOPE * h)              # LeakyReLU (VPU)
    o_ref[...] = h.astype(o_ref.dtype)


def prepare_params(params):
    """One-time conversion from PyTorch layout to MXU-friendly layout.

    params: list of (W (out, in), b (out,))  ->  flat list [w0.T, b0[None], ...]
    """
    flat = []
    for w, b in params:
        flat.append(jnp.asarray(w).T)                 # (in, out): lane axis = out
        flat.append(jnp.asarray(b).reshape(1, -1))    # (1, out)
    return flat


def _cdiv(a, b):
    return -(-a // b)


def _round_up(a, m):
    return _cdiv(a, m) * m


def _padded_cols(d):
    return _round_up(d, _LANE)           # every (B, d) VMEM tile pads d to 128 lanes


def _max_batch_block(widths, x_itemsize, out_itemsize,
                     budget_bytes=24 << 20, cap=4096):
    """Largest batch tile whose pipeline working set fits `budget_bytes`.

    Counts double-buffered input/output tiles plus one f32 copy of every
    intermediate activation, all lane-padded to 128.  `cap` keeps the tile
    safe for v7x's 64 MiB physical VMEM.
    """
    in_dim, out_dim = widths[0], widths[-1]
    per_row = (2 * x_itemsize * _padded_cols(in_dim)
               + 2 * out_itemsize * _padded_cols(out_dim)
               + 4 * sum(_padded_cols(d) for d in widths))
    bb = (budget_bytes // per_row // 256) * 256
    return max(256, min(cap, bb))


def mlp_readout_forward(x, prepared_params, *, batch_block=None,
                        no_grid_threshold=512):
    """MLPReadout.forward with encoder=None, as one fused Pallas kernel."""
    n_layers = len(prepared_params) // 2
    batch, in_dim = x.shape
    out_dim = prepared_params[-1].shape[-1]
    widths = (in_dim,) + tuple(prepared_params[2 * i].shape[-1]
                               for i in range(n_layers))
    out_dtype = x.dtype
    out_itemsize = jnp.dtype(out_dtype).itemsize
    kernel = functools.partial(_fused_mlp_kernel, n_layers=n_layers)
    vmem = pltpu.MemorySpace.VMEM

    weight_bytes = sum(int(p.size) * p.dtype.itemsize for p in prepared_params)
    cost = pl.CostEstimate(
        flops=2 * batch * sum(widths[i] * widths[i + 1] for i in range(n_layers)),
        transcendentals=0,
        bytes_accessed=(batch * in_dim * x.dtype.itemsize
                        + batch * out_dim * out_itemsize
                        + weight_bytes))

    vmem_limit = 48 * 1024 * 1024   # above scoped defaults, below v7x physical

    if batch <= no_grid_threshold:
        # Small batch: single invocation, whole arrays resident in VMEM,
        # no grid / pipelining machinery, single HBM writeback of the output.
        return pl.pallas_call(
            kernel,
            out_shape=jax.ShapeDtypeStruct((batch, out_dim), out_dtype),
            in_specs=[pl.BlockSpec(memory_space=vmem)] * (1 + len(prepared_params)),
            out_specs=pl.BlockSpec(memory_space=vmem),
            cost_estimate=cost,
            compiler_params=pltpu.CompilerParams(vmem_limit_bytes=vmem_limit),
        )(x, *prepared_params)

    # Large batch: tile the batch axis (parallel across cores); weights are
    # small and stay fully resident in VMEM for every tile.  No jnp.pad / no
    # output slice: Pallas masks the ragged last block's writeback.
    if batch_block is None:
        batch_block = _max_batch_block(widths, x.dtype.itemsize, out_itemsize)
    # At least 2 blocks so both v7x TensorCores get work.
    batch_block = min(batch_block, _round_up(_cdiv(batch, 2), _SUBLANE))
    batch_block = max(batch_block, _SUBLANE)
    n_blocks = _cdiv(batch, batch_block)

    in_specs = [pl.BlockSpec((batch_block, in_dim), lambda i: (i, 0))]
    for arr in prepared_params:
        in_specs.append(pl.BlockSpec(arr.shape, lambda i: (0, 0)))

    return pl.pallas_call(
        kernel,
        out_shape=jax.ShapeDtypeStruct((batch, out_dim), out_dtype),
        grid=(n_blocks,),
        in_specs=in_specs,
        out_specs=pl.BlockSpec((batch_block, out_dim), lambda i: (i, 0)),
        cost_estimate=cost,
        compiler_params=pltpu.CompilerParams(
            dimension_semantics=("parallel",),
            vmem_limit_bytes=vmem_limit),
    )(x, *prepared_params)


def init_mlp_params(key, sizes, use_bias=True):
    """Deterministic params for nn.Linear(sizes[i], sizes[i+1]) (PyTorch layout)."""
    params = []
    for i in range(len(sizes) - 1):
        key, kw, kb = jax.random.split(key, 3)
        fan_in = sizes[i]
        bound = 1.0 / jnp.sqrt(fan_in)
        w = jax.random.uniform(kw, (sizes[i + 1], sizes[i]),
                               minval=-bound, maxval=bound, dtype=jnp.float32)
        if use_bias:
            b = jax.random.uniform(kb, (sizes[i + 1],),
                                   minval=-bound, maxval=bound, dtype=jnp.float32)
        else:
            b = jnp.zeros((sizes[i + 1],), jnp.float32)
        params.append((w, b))
    return params


def mlp_readout_reference(x, params):
    """Pure-JAX reference in PyTorch Linear convention."""
    n_layers = len(params)
    for i, (w, b) in enumerate(params):
        x = x @ w.T + b
        if i < n_layers - 1:
            x = jnp.where(x >= 0.0, x, LEAKY_SLOPE * x)
    return x


if __name__ == "__main__":
    key = jax.random.PRNGKey(0)
    sizes = (32, 64, 48, 10)   # MLPReadout(sizes=(32, 64, 48, 10))

    key, kx, kp = jax.random.split(key, 3)
    params = init_mlp_params(kp, sizes, use_bias=True)
    prepared = prepare_params(params)          # one-time (in,out)/(1,out) layout

    # Small-batch path (no grid, whole-array VMEM).
    batch = 8
    x = jax.random.normal(kx, (batch, sizes[0]), dtype=jnp.float32)
    out = jax.block_until_ready(mlp_readout_forward(x, prepared))
    ref = mlp_readout_reference(x, params)
    assert out.shape == (batch, sizes[-1])
    assert out.dtype == x.dtype
    assert jnp.allclose(out, ref, atol=1e-4, rtol=1e-4), "mismatch (small batch)"

    # Batch-tiled path: ragged (non-divisible) batch, >= 2 grid blocks,
    # no wrapper-side pad/slice.
    key, kx2 = jax.random.split(key)
    batch2 = 600
    x2 = jax.random.normal(kx2, (batch2, sizes[0]), dtype=jnp.float32)
    out2 = jax.block_until_ready(mlp_readout_forward(x2, prepared))
    ref2 = mlp_readout_reference(x2, params)
    assert out2.shape == (batch2, sizes[-1])
    assert jnp.allclose(out2, ref2, atol=1e-4, rtol=1e-4), "mismatch (tiled batch)"

    print("KERNEL_OK")
</pallas_src>

<mosaic_0001>
module attributes {stable_mosaic.version = 11 : i64} {
  func.func @_fused_mlp_kernel(%arg0: memref<8x32xf32, #tpu.memory_space<vmem>>, %arg1: memref<32x64xf32, #tpu.memory_space<vmem>>, %arg2: memref<1x64xf32, #tpu.memory_space<vmem>>, %arg3: memref<64x48xf32, #tpu.memory_space<vmem>>, %arg4: memref<1x48xf32, #tpu.memory_space<vmem>>, %arg5: memref<48x10xf32, #tpu.memory_space<vmem>>, %arg6: memref<1x10xf32, #tpu.memory_space<vmem>>, %arg7: memref<8x10xf32, #tpu.memory_space<vmem>>) attributes {dimension_semantics = [], scalar_prefetch = 0 : i64, scratch_operands = 0 : i64, tpu.core_type = #tpu.core_type<tc>} {
    %c0 = arith.constant 0 : index
    %c0_0 = arith.constant 0 : index
    %0 = vector.load %arg0[%c0, %c0_0] : memref<8x32xf32, #tpu.memory_space<vmem>>, vector<8x32xf32>
    %c0_1 = arith.constant 0 : index
    %c0_2 = arith.constant 0 : index
    %1 = vector.load %arg1[%c0_1, %c0_2] : memref<32x64xf32, #tpu.memory_space<vmem>>, vector<32x64xf32>
    %c0_3 = arith.constant 0 : index
    %c0_4 = arith.constant 0 : index
    %2 = vector.load %arg2[%c0_3, %c0_4] : memref<1x64xf32, #tpu.memory_space<vmem>>, vector<1x64xf32>
    %cst = arith.constant dense<0.000000e+00> : vector<8x64xf32>
    %3 = tpu.matmul %0, %1, %cst {dimension_numbers = #tpu.dot_dimension_numbers<[1], [0], [0], [1], [0, 0, 1, 1], [], []>} : vector<8x32xf32>, vector<32x64xf32>, vector<8x64xf32> -> vector<8x64xf32>
    %4 = vector.broadcast %2 : vector<1x64xf32> to vector<8x64xf32>
    %5 = arith.addf %3, %4 : vector<8x64xf32>
    %cst_5 = arith.constant 0.000000e+00 : f32
    %6 = vector.broadcast %cst_5 : f32 to vector<8x64xf32>
    %7 = arith.cmpf oge, %5, %6 : vector<8x64xf32>
    %cst_6 = arith.constant 0.00999999977 : f32
    %8 = vector.broadcast %cst_6 : f32 to vector<8x64xf32>
    %9 = arith.mulf %8, %5 : vector<8x64xf32>
    %10 = arith.select %7, %5, %9 : vector<8x64xi1>, vector<8x64xf32>
    %c0_7 = arith.constant 0 : index
    %c0_8 = arith.constant 0 : index
    %11 = vector.load %arg3[%c0_7, %c0_8] : memref<64x48xf32, #tpu.memory_space<vmem>>, vector<64x48xf32>
    %c0_9 = arith.constant 0 : index
    %c0_10 = arith.constant 0 : index
    %12 = vector.load %arg4[%c0_9, %c0_10] : memref<1x48xf32, #tpu.memory_space<vmem>>, vector<1x48xf32>
    %cst_11 = arith.constant dense<0.000000e+00> : vector<8x48xf32>
    %13 = tpu.matmul %10, %11, %cst_11 {dimension_numbers = #tpu.dot_dimension_numbers<[1], [0], [0], [1], [0, 0, 1, 1], [], []>} : vector<8x64xf32>, vector<64x48xf32>, vector<8x48xf32> -> vector<8x48xf32>
    %14 = vector.broadcast %12 : vector<1x48xf32> to vector<8x48xf32>
    %15 = arith.addf %13, %14 : vector<8x48xf32>
    %cst_12 = arith.constant 0.000000e+00 : f32
    %16 = vector.broadcast %cst_12 : f32 to vector<8x48xf32>
    %17 = arith.cmpf oge, %15, %16 : vector<8x48xf32>
    %cst_13 = arith.constant 0.00999999977 : f32
    %18 = vector.broadcast %cst_13 : f32 to vector<8x48xf32>
    %19 = arith.mulf %18, %15 : vector<8x48xf32>
    %20 = arith.select %17, %15, %19 : vector<8x48xi1>, vector<8x48xf32>
    %c0_14 = arith.constant 0 : index
    %c0_15 = arith.constant 0 : index
    %21 = vector.load %arg5[%c0_14, %c0_15] : memref<48x10xf32, #tpu.memory_space<vmem>>, vector<48x10xf32>
    %c0_16 = arith.constant 0 : index
    %c0_17 = arith.constant 0 : index
    %22 = vector.load %arg6[%c0_16, %c0_17] : memref<1x10xf32, #tpu.memory_space<vmem>>, vector<1x10xf32>
    %cst_18 = arith.constant dense<0.000000e+00> : vector<8x10xf32>
    %23 = tpu.matmul %20, %21, %cst_18 {dimension_numbers = #tpu.dot_dimension_numbers<[1], [0], [0], [1], [0, 0, 1, 1], [], []>} : vector<8x48xf32>, vector<48x10xf32>, vector<8x10xf32> -> vector<8x10xf32>
    %24 = vector.broadcast %22 : vector<1x10xf32> to vector<8x10xf32>
    %25 = arith.addf %23, %24 : vector<8x10xf32>
    %c0_19 = arith.constant 0 : index
    %c0_20 = arith.constant 0 : index
    %26 = vector.load %arg7[%c0_19, %c0_20] : memref<8x10xf32, #tpu.memory_space<vmem>>, vector<8x10xf32>
    tpu.vector_store %arg7[%c0_19, %c0_20], %25 {strides = array<i32>} : memref<8x10xf32, #tpu.memory_space<vmem>>, vector<8x10xf32>,
    return
  }
}

</mosaic_0001>

<llo_original>
// kernel: tpu_custom_call.1
$region0: #{tpu_custom_call.1}
  #allocation0 [shape = 'u32[]', space=smem, size = 0x4, offset = 0x4, fixed_abs, tag = 'smem constant byte address 0x4 - core index']
  #allocation1 [shape = 'u32[72,128]{1,0:T(1,128)}', space=vmem, size = 0x9000, scoped, tag = 'internal scratch']
  %s0 = inlined_call_operand.vmem [shape: f32[8,32], index: 0, kind: input, shape index: {}]
  %s1 = inlined_call_operand.vmem [shape: f32[32,64], index: 1, kind: input, shape index: {}]
  %s2 = inlined_call_operand.vmem [shape: f32[1,64], index: 2, kind: input, shape index: {}]
  %s3 = inlined_call_operand.vmem [shape: f32[64,48], index: 3, kind: input, shape index: {}]
  %s4 = inlined_call_operand.vmem [shape: f32[1,48], index: 4, kind: input, shape index: {}]
  %s5 = inlined_call_operand.vmem [shape: f32[48,10], index: 5, kind: input, shape index: {}]
  %s6 = inlined_call_operand.vmem [shape: f32[1,10], index: 6, kind: input, shape index: {}]
  %s7 = inlined_call_operand.hbm [shape: f32[8,10], index: 7, kind: output, shape index: {}]
  %s8 = sld [smem:[#allocation0]]
  $region38: #{tpu_custom_call.1} parent=0
    _
  %s10 = ssub.s32 1, %s8
  %s11 = scalar_select 0, %s10, %s8
  $region1: #{tpu_custom_call.1} parent=0
    #allocation2 [shape = 'u8[4096]{0}', space=vmem, size = 0x1000, scoped, tag = 'output window, operand 0, single buffered']
    #allocation3 [shape = 's32[1]{0}', space=sflag, size = 0x4, scoped, tag = 'scoped memory for tpu_custom_call.1']
    %12 = vsyncpa [#allocation3], 0
    // Predicated region
    $region2: #{tpu_custom_call.1} parent=1 // pred_check
      _
    $region3: #{tpu_custom_call.1} parent=1 // pred_check_branch
      %14 = sbr.rel (0) target = $region5
    $region4: #{tpu_custom_call.1} parent=1 // pred_region
      _
    $region5: #{tpu_custom_call.1} parent=1 // pred_fallthru
      _
    // Predicated region
    $region6: #{tpu_custom_call.1} parent=1 // pred_check
      _
    $region7: #{tpu_custom_call.1} parent=1 // pred_check_branch
      %16 = sbr.rel (0) target = $region9
    $region8: #{tpu_custom_call.1} parent=1 // pred_region
      _
    $region9: #{tpu_custom_call.1} parent=1 // pred_fallthru
      _
    // Predicated region
    $region10: #{tpu_custom_call.1} parent=1 // pred_check
      _
    $region11: #{tpu_custom_call.1} parent=1 // pred_check_branch
      %18 = sbr.rel (0) target = $region13
    $region12: #{tpu_custom_call.1} parent=1 // pred_region
      _
    $region13: #{tpu_custom_call.1} parent=1 // pred_fallthru
      _
    // Predicated region
    $region14: #{tpu_custom_call.1} parent=1 // pred_check
      _
    $region15: #{tpu_custom_call.1} parent=1 // pred_check_branch
      %20 = sbr.rel (0) target = $region17
    $region16: #{tpu_custom_call.1} parent=1 // pred_region
      _
    $region17: #{tpu_custom_call.1} parent=1 // pred_fallthru
      _
    // Predicated region
    $region18: #{tpu_custom_call.1} parent=1 // pred_check
      _
    $region19: #{tpu_custom_call.1} parent=1 // pred_check_branch
      %22 = sbr.rel (0) target = $region21
    $region20: #{tpu_custom_call.1} parent=1 // pred_region
      _
    $region21: #{tpu_custom_call.1} parent=1 // pred_fallthru
      _
    // Predicated region
    $region22: #{tpu_custom_call.1} parent=1 // pred_check
      _
    $region23: #{tpu_custom_call.1} parent=1 // pred_check_branch
      %24 = sbr.rel (0) target = $region25
    $region24: #{tpu_custom_call.1} parent=1 // pred_region
      _
    $region25: #{tpu_custom_call.1} parent=1 // pred_fallthru
      _
    // Predicated region
    $region26: #{tpu_custom_call.1} parent=1 // pred_check
      _
    $region27: #{tpu_custom_call.1} parent=1 // pred_check_branch
      %26 = sbr.rel (0) target = $region29
    $region28: #{tpu_custom_call.1} parent=1 // pred_region
      _
    $region29: #{tpu_custom_call.1} parent=1 // pred_fallthru
      _
    %v27 = vld [vmem:[%s0] sm:$0xff]
    %v28 = vld [vmem:[%s1] sm:$0xff]
    %v29 = vld [vmem:[%s1 + $0x8] sm:$0xff]
    %v30 = vld [vmem:[%s1 + $0x10] sm:$0xff]
    %v31 = vld [vmem:[%s1 + $0x18] sm:$0xff]
    %v32 = vld [vmem:[%s2] sm:$0x1]
    %v34 = vperm.slane %v32, 0
    %vm36 = vcmask 261120
    %v38 = vsel %vm36, %v27, 0
    %40 = vmatpush.msra.mxu0 0.0
    %41 = vmatpush.msra.mxu0 0.0
    %42 = vmatpush.msra.mxu0 0.0
    %43 = vmatpush.msra.mxu0 0.0
    %44 = vmatpush.msra.mxu0 0.0
    %45 = vmatpush.msra.mxu0 0.0
    %46 = vmatpush.msra.mxu0 0.0
    %47 = vmatpush.msra.mxu0 0.0
    %48 = vmatpush.msra.mxu0 0.0
    %49 = vmatpush.msra.mxu0 0.0
    %50 = vmatpush.msra.mxu0 0.0
    %51 = vmatpush.msra.mxu0 0.0
    %52 = vmatpush.msra.mxu0 %v31
    %53 = vmatpush.msra.mxu0 %v30
    %54 = vmatpush.msra.mxu0 %v29
    %55 = vmatpush.msra.mxu0 %v28
    %56 = vmatmul.f32.gmra.mxu0 %v38
    %v57 = vpop.f32.mrf.mxu0
    %v58 = vadd.f32 %v34, %v57
    %59 = vdwg.mxu0
    %vm60 = vcmp.ge.f32.partialorder %v58, 0.0
    %v61 = vmul.f32 %v58, 0.01
    %v62 = vsel %vm60, %v58, %v61
    %v63 = vld [vmem:[%s3] sm:$0xff]
    %v64 = vld [vmem:[%s3 + $0x8] sm:$0xff]
    %v65 = vld [vmem:[%s3 + $0x10] sm:$0xff]
    %v66 = vld [vmem:[%s3 + $0x18] sm:$0xff]
    %v67 = vld [vmem:[%s3 + $0x20] sm:$0xff]
    %v68 = vld [vmem:[%s3 + $0x28] sm:$0xff]
    %v69 = vld [vmem:[%s3 + $0x30] sm:$0xff]
    %v70 = vld [vmem:[%s3 + $0x38] sm:$0xff]
    %v71 = vld [vmem:[%s4] sm:$0x1]
    %v73 = vperm.slane %v71, 0
    %vm75 = vcmask 523264
    %v77 = vsel %vm75, %v62, 0
    %79 = vmatpush.msra.mxu0 0.0
    %80 = vmatpush.msra.mxu0 0.0
    %81 = vmatpush.msra.mxu0 0.0
    %82 = vmatpush.msra.mxu0 0.0
    %83 = vmatpush.msra.mxu0 0.0
    %84 = vmatpush.msra.mxu0 0.0
    %85 = vmatpush.msra.mxu0 0.0
    %86 = vmatpush.msra.mxu0 0.0
    %87 = vmatpush.msra.mxu0 %v70
    %88 = vmatpush.msra.mxu0 %v69
    %89 = vmatpush.msra.mxu0 %v68
    %90 = vmatpush.msra.mxu0 %v67
    %91 = vmatpush.msra.mxu0 %v66
    %92 = vmatpush.msra.mxu0 %v65
    %93 = vmatpush.msra.mxu0 %v64
    %94 = vmatpush.msra.mxu0 %v63
    %95 = vmatmul.f32.gmra.mxu0 %v77
    %v96 = vpop.f32.mrf.mxu0
    %v97 = vadd.f32 %v73, %v96
    %98 = vdwg.mxu0
    %vm99 = vcmp.ge.f32.partialorder %v97, 0.0
    %v100 = vmul.f32 %v97, 0.01
    %v101 = vsel %vm99, %v97, %v100
    %v102 = vld [vmem:[%s5] sm:$0xff]
    %v103 = vld [vmem:[%s5 + $0x8] sm:$0xff]
    %v104 = vld [vmem:[%s5 + $0x10] sm:$0xff]
    %v105 = vld [vmem:[%s5 + $0x18] sm:$0xff]
    %v106 = vld [vmem:[%s5 + $0x20] sm:$0xff]
    %v107 = vld [vmem:[%s5 + $0x28] sm:$0xff]
    %v108 = vld [vmem:[%s6] sm:$0x1]
    %v110 = vperm.slane %v108, 0
    %vm112 = vcmask 392192
    %v114 = vsel %vm112, %v101, 0
    %116 = vmatpush.msra.mxu0 0.0
    %117 = vmatpush.msra.mxu0 0.0
    %118 = vmatpush.msra.mxu0 0.0
    %119 = vmatpush.msra.mxu0 0.0
    %120 = vmatpush.msra.mxu0 0.0
    %121 = vmatpush.msra.mxu0 0.0
    %122 = vmatpush.msra.mxu0 0.0
    %123 = vmatpush.msra.mxu0 0.0
    %124 = vmatpush.msra.mxu0 0.0
    %125 = vmatpush.msra.mxu0 0.0
    %126 = vmatpush.msra.mxu0 %v107
    %127 = vmatpush.msra.mxu0 %v106
    %128 = vmatpush.msra.mxu0 %v105
    %129 = vmatpush.msra.mxu0 %v104
    %130 = vmatpush.msra.mxu0 %v103
    %131 = vmatpush.msra.mxu0 %v102
    %132 = vmatmul.f32.gmra.mxu0 %v114
    %v133 = vpop.f32.mrf.mxu0
    %v134 = vadd.f32 %v110, %v133
    %135 = vdwg.mxu0
    %vm136 = vcmask 80896
    %137 = vst.msk [vmem:[#allocation2] sm:$0xff] %vm136, %v134
    // Predicated region
    $region30: #{tpu_custom_call.1} parent=1 // pred_check
      _
    $region31: #{tpu_custom_call.1} parent=1 // pred_check_branch
      %139 = sbr.rel (0) target = $region33
    $region32: #{tpu_custom_call.1} parent=1 // pred_region
      %141 = vsyncadd [#allocation3], 0
      %s143 = sshll.u32 [#allocation2], 4
      %s144 = int_to_ptr.vmem [resolvable:$true] %s143
      %s145 = sshll.u32 %s7, 4
      %s146 = int_to_ptr.hbm [resolvable:$true] %s145
      %148 = dma.vmem_to_hbm [thread:$0]  %s144, 128, %s146, [#allocation3]
    $region33: #{tpu_custom_call.1} parent=1 // pred_fallthru
      _
    // Predicated region
    $region34: #{tpu_custom_call.1} parent=1 // pred_check
      _
    $region35: #{tpu_custom_call.1} parent=1 // pred_check_branch
      %150 = sbr.rel (0) target = $region37
    $region36: #{tpu_custom_call.1} parent=1 // pred_region
      %152 = dma.done [#allocation3], 128
    $region37: #{tpu_custom_call.1} parent=1 // pred_fallthru
      _
    %153 = vsyncpa [#allocation3], 1

</llo_original>
